<compile_context>
chip_gen: v7x
topology: tpu7x:2x2x1
jax: 0.10.0
libtpu: 0.0.40
codegen_flags: <defaults>
</compile_context>

<pallas_src>
import functools
import numpy as np
import jax
import jax.numpy as jnp
from jax.experimental import pallas as pl
from jax.experimental.pallas import tpu as pltpu


def _round_up(x, m):
    return ((x + m - 1) // m) * m


MAX_TILE_B = 2048  # sweepable; working set at 2048 is only ~3 MiB of VMEM


# ---------------------------------------------------------------------------
# Kernel: fused block-diagonal forward of BOTH heads, transposed narrow output.
# x_ref:   (TILE_B, D_PAD)       f32
# p_ref:   (D_PAD + 2*F + 8, F)  f32  packed [W1 ; W2 ; W3 ; bias-block(8 rows)]
# out_ref: (8, TILE_B)           f32  lane-dense slab: rows 0..A-1 = logits^T,
#                                     row A = value, rows A+1..7 unused.
# ---------------------------------------------------------------------------
def mlp_base_kernel(x_ref, p_ref, out_ref, *, d_pad, feat):
    x = x_ref[...]                                       # (TILE_B, d_pad)

    w1 = p_ref[0:d_pad, :]                               # (d_pad, feat)
    w2 = p_ref[d_pad:d_pad + feat, :]                    # (feat, feat)
    w3 = p_ref[d_pad + feat:d_pad + 2 * feat, :]         # (feat, feat)
    b_base = d_pad + 2 * feat
    bias = p_ref[b_base:b_base + 8, :]                   # aligned 8-row bias block
    b1 = bias[0:1, :]
    b2 = bias[1:2, :]
    b3 = bias[2:3, :]

    h = jnp.tanh(jnp.dot(x, w1, preferred_element_type=jnp.float32) + b1)
    h = jnp.tanh(jnp.dot(h, w2, preferred_element_type=jnp.float32) + b2)
    y = jnp.dot(h, w3, preferred_element_type=jnp.float32) + b3   # (TILE_B, feat)

    # XLU transpose (free bundle slot), then write only the 8 useful rows
    # -> lane-dense (8, TILE_B) store instead of a (TILE_B, 128) slab.
    yt = y.T                                             # (feat, TILE_B)
    out_ref[...] = yt[0:8, :]


# ---------------------------------------------------------------------------
# Pack the 12 parameter arrays into one lane-dense (ROWS, F) buffer.
# Actor occupies lanes [0, H); critic lanes [H, 2H) of the fused hidden state.
# Final layer: actor -> output cols [0, A) (logits), critic -> col A (value).
# ---------------------------------------------------------------------------
def pack_mlp_base_params(actor_params, critic_params):
    w1a, b1a, w2a, b2a, w3a, b3a = actor_params
    w1c, b1c, w2c, b2c, w3c, b3c = critic_params
    D, H = w1a.shape
    A = w3a.shape[1]                       # num_outputs
    assert w1c.shape == (D, H) and w3c.shape == (H, 1)
    assert A + 1 <= 8, "transposed output slab holds at most 8 rows"

    D_pad = _round_up(D, 8)
    F = _round_up(max(2 * H, A + 1), 128)  # fused lane width (128 for hidden=64)

    W1 = jnp.zeros((D_pad, F), jnp.float32)
    W1 = W1.at[:D, :H].set(w1a).at[:D, H:2 * H].set(w1c)

    W2 = jnp.zeros((F, F), jnp.float32)
    W2 = W2.at[:H, :H].set(w2a).at[H:2 * H, H:2 * H].set(w2c)

    W3 = jnp.zeros((F, F), jnp.float32)
    W3 = W3.at[:H, :A].set(w3a).at[H:2 * H, A:A + 1].set(w3c)

    BIAS = jnp.zeros((8, F), jnp.float32)  # 8-row (sublane-aligned) bias block
    BIAS = BIAS.at[0, :H].set(b1a.reshape(H)).at[0, H:2 * H].set(b1c.reshape(H))
    BIAS = BIAS.at[1, :H].set(b2a.reshape(H)).at[1, H:2 * H].set(b2c.reshape(H))
    BIAS = BIAS.at[2, :A].set(b3a.reshape(A)).at[2, A:A + 1].set(b3c.reshape(1))

    packed = jnp.concatenate([W1, W2, W3, BIAS], axis=0)  # (D_pad + 2F + 8, F)
    return packed


def _choose_tile(B):
    """Pick the batch tile: big tiles to amortize ~0.35us/step overhead, but
    >= 2 grid steps for B > 256 so both v7x TensorCores get work."""
    if B <= 256:
        tile_b = _round_up(max(B, 8), 8)
    else:
        half = -(-B // 2)                      # cdiv(B, 2)
        tile_b = min(MAX_TILE_B, _round_up(half, 128))
    b_pad = _round_up(B, tile_b)
    return tile_b, b_pad


# ---------------------------------------------------------------------------
# Forward wrapper: (optionally) pads batch/features, runs the fused kernel over
# a 1-D batch grid, and slices (value, logits) out of the narrow transposed
# output slab.
# ---------------------------------------------------------------------------
def mlp_base_forward(x, packed_params, *, num_outputs):
    B, D = x.shape
    D_pad = _round_up(D, 8)
    rows, F = packed_params.shape
    # Guard against a packing/observation-width mismatch (would silently read
    # the wrong weight rows otherwise).
    assert rows == D_pad + 2 * F + 8, (
        f"packed_params rows ({rows}) inconsistent with input width {D} "
        f"(expected {D_pad + 2 * F + 8})")
    assert num_outputs + 1 <= 8

    tile_b, b_pad = _choose_tile(B)

    x = x.astype(jnp.float32)
    if D != D_pad or B != b_pad:
        # Pad only the remainder; no full zeros+scatter pass when not needed.
        xp = jnp.pad(x, ((0, b_pad - B), (0, D_pad - D)))
    else:
        xp = x

    kernel = functools.partial(mlp_base_kernel, d_pad=D_pad, feat=F)

    out = pl.pallas_call(
        kernel,
        out_shape=jax.ShapeDtypeStruct((8, b_pad), jnp.float32),
        grid_spec=pltpu.PrefetchScalarGridSpec(
            num_scalar_prefetch=0,
            grid=(b_pad // tile_b,),
            in_specs=[
                pl.BlockSpec((tile_b, D_pad), lambda i: (i, 0)),
                pl.BlockSpec((rows, F), lambda i: (0, 0)),   # params resident
            ],
            out_specs=pl.BlockSpec((8, tile_b), lambda i: (0, i)),
        ),
        compiler_params=pltpu.CompilerParams(
            dimension_semantics=("parallel",)),
    )(xp, packed_params)

    # Rows 0..A-1: logits (transposed); row A: value.
    logits = out[:num_outputs, :B].T                  # (B, num_outputs)
    value = out[num_outputs:num_outputs + 1, :B].T    # (B, 1)
    return value, logits


# ---------------------------------------------------------------------------
# Deterministic parameter init mirroring torch.nn.init.orthogonal_ (gain) and
# zero bias.  Weights stored as (in_features, out_features) so y = x @ W + b.
# ---------------------------------------------------------------------------
def orthogonal_weight(key, fan_in, fan_out, gain):
    big, small = max(fan_in, fan_out), min(fan_in, fan_out)
    a = jax.random.normal(key, (big, small), dtype=jnp.float32)
    q, r = jnp.linalg.qr(a)                      # q: (big, small)
    q = q * jnp.sign(jnp.diag(r))[None, :]       # unique decomposition
    w = q if fan_in >= fan_out else q.T          # -> (fan_in, fan_out)
    return (gain * w).astype(jnp.float32)


def make_mlp_params(key, num_inputs, num_outputs, hidden_size, last_gain):
    k1, k2, k3 = jax.random.split(key, 3)
    g = float(np.sqrt(2.0))
    w1 = orthogonal_weight(k1, num_inputs, hidden_size, g)
    b1 = jnp.zeros((1, hidden_size), jnp.float32)
    w2 = orthogonal_weight(k2, hidden_size, hidden_size, g)
    b2 = jnp.zeros((1, hidden_size), jnp.float32)
    w3 = orthogonal_weight(k3, hidden_size, num_outputs, last_gain)
    b3 = jnp.zeros((1, num_outputs), jnp.float32)
    return (w1, b1, w2, b2, w3, b3)


def reference_forward(x, params):
    w1, b1, w2, b2, w3, b3 = params
    h = jnp.tanh(x @ w1 + b1)
    h = jnp.tanh(h @ w2 + b2)
    return h @ w3 + b3


if __name__ == "__main__":
    num_inputs, num_outputs, hidden_size = 32, 4, 64

    key = jax.random.PRNGKey(0)
    kx, ka, kc, kx2 = jax.random.split(key, 4)

    actor_params = make_mlp_params(
        ka, num_inputs, num_outputs, hidden_size, last_gain=1.0)
    critic_params = make_mlp_params(
        kc, num_inputs, 1, hidden_size, last_gain=float(np.sqrt(2.0)))

    # Pack once (as one would at module init time) -> single param DMA per call.
    packed = pack_mlp_base_params(actor_params, critic_params)

    fwd = jax.jit(mlp_base_forward, static_argnames=("num_outputs",))

    # --- small-batch (inference-style) check -------------------------------
    B = 8
    x = jax.random.normal(kx, (B, num_inputs), dtype=jnp.float32)
    value, logits = fwd(x, packed, num_outputs=num_outputs)
    jax.block_until_ready((value, logits))

    value_ref = reference_forward(x, critic_params)
    logits_ref = reference_forward(x, actor_params)
    assert value.shape == (B, 1) and logits.shape == (B, num_outputs)
    np.testing.assert_allclose(np.asarray(value), np.asarray(value_ref),
                               rtol=1e-3, atol=1e-3)
    np.testing.assert_allclose(np.asarray(logits), np.asarray(logits_ref),
                               rtol=1e-3, atol=1e-3)

    # --- multi-tile (2-step parallel grid) check ---------------------------
    B2 = 512
    x2 = jax.random.normal(kx2, (B2, num_inputs), dtype=jnp.float32)
    value2, logits2 = fwd(x2, packed, num_outputs=num_outputs)
    jax.block_until_ready((value2, logits2))

    value2_ref = reference_forward(x2, critic_params)
    logits2_ref = reference_forward(x2, actor_params)
    assert value2.shape == (B2, 1) and logits2.shape == (B2, num_outputs)
    np.testing.assert_allclose(np.asarray(value2), np.asarray(value2_ref),
                               rtol=1e-3, atol=1e-3)
    np.testing.assert_allclose(np.asarray(logits2), np.asarray(logits2_ref),
                               rtol=1e-3, atol=1e-3)

    print("KERNEL_OK")
</pallas_src>

<mosaic_0001>
module attributes {stable_mosaic.version = 11 : i64} {
  func.func @mlp_base_kernel(%arg0: i32, %arg1: memref<8x32xf32, #tpu.memory_space<vmem>>, %arg2: memref<296x128xf32, #tpu.memory_space<vmem>>, %arg3: memref<8x8xf32, #tpu.memory_space<vmem>>) attributes {dimension_semantics = [#tpu.dimension_semantics<parallel>], iteration_bounds = array<i64: 1>, scalar_prefetch = 0 : i64, scratch_operands = 0 : i64, tpu.core_type = #tpu.core_type<tc>, window_params = [{transform_indices = @transform_0, window_bounds = array<i64: 8, 32>}, {pipeline_mode = #tpu.pipeline_mode<synchronous>, transform_indices = @transform_1, window_bounds = array<i64: 296, 128>}, {transform_indices = @transform_2, window_bounds = array<i64: 8, 8>}]} {
    %c0 = arith.constant 0 : index
    %c0_0 = arith.constant 0 : index
    %0 = vector.load %arg1[%c0, %c0_0] : memref<8x32xf32, #tpu.memory_space<vmem>>, vector<8x32xf32>
    %c0_1 = arith.constant 0 : index
    %c0_2 = arith.constant 0 : index
    %1 = vector.load %arg2[%c0_1, %c0_2] : memref<296x128xf32, #tpu.memory_space<vmem>>, vector<32x128xf32>
    %c32 = arith.constant 32 : index
    %c0_3 = arith.constant 0 : index
    %2 = vector.load %arg2[%c32, %c0_3] : memref<296x128xf32, #tpu.memory_space<vmem>>, vector<128x128xf32>
    %c160 = arith.constant 160 : index
    %c0_4 = arith.constant 0 : index
    %3 = vector.load %arg2[%c160, %c0_4] : memref<296x128xf32, #tpu.memory_space<vmem>>, vector<128x128xf32>
    %c288 = arith.constant 288 : index
    %c0_5 = arith.constant 0 : index
    %4 = vector.load %arg2[%c288, %c0_5] : memref<296x128xf32, #tpu.memory_space<vmem>>, vector<8x128xf32>
    %5 = vector.extract_strided_slice %4 {offsets = [0, 0], sizes = [1, 128], strides = [1, 1]} : vector<8x128xf32> to vector<1x128xf32>
    %6 = vector.extract_strided_slice %4 {offsets = [1, 0], sizes = [1, 128], strides = [1, 1]} : vector<8x128xf32> to vector<1x128xf32>
    %7 = vector.extract_strided_slice %4 {offsets = [2, 0], sizes = [1, 128], strides = [1, 1]} : vector<8x128xf32> to vector<1x128xf32>
    %cst = arith.constant dense<0.000000e+00> : vector<8x128xf32>
    %8 = tpu.matmul %0, %1, %cst {dimension_numbers = #tpu.dot_dimension_numbers<[1], [0], [0], [1], [0, 0, 1, 1], [], []>} : vector<8x32xf32>, vector<32x128xf32>, vector<8x128xf32> -> vector<8x128xf32>
    %9 = vector.broadcast %5 : vector<1x128xf32> to vector<8x128xf32>
    %10 = arith.addf %8, %9 : vector<8x128xf32>
    %11 = math.tanh %10 : vector<8x128xf32>
    %cst_6 = arith.constant dense<0.000000e+00> : vector<8x128xf32>
    %12 = tpu.matmul %11, %2, %cst_6 {dimension_numbers = #tpu.dot_dimension_numbers<[1], [0], [0], [1], [0, 0, 1, 1], [], []>} : vector<8x128xf32>, vector<128x128xf32>, vector<8x128xf32> -> vector<8x128xf32>
    %13 = vector.broadcast %6 : vector<1x128xf32> to vector<8x128xf32>
    %14 = arith.addf %12, %13 : vector<8x128xf32>
    %15 = math.tanh %14 : vector<8x128xf32>
    %cst_7 = arith.constant dense<0.000000e+00> : vector<8x128xf32>
    %16 = tpu.matmul %15, %3, %cst_7 {dimension_numbers = #tpu.dot_dimension_numbers<[1], [0], [0], [1], [0, 0, 1, 1], [], []>} : vector<8x128xf32>, vector<128x128xf32>, vector<8x128xf32> -> vector<8x128xf32>
    %17 = vector.broadcast %7 : vector<1x128xf32> to vector<8x128xf32>
    %18 = arith.addf %16, %17 : vector<8x128xf32>
    %19 = tpu.transpose %18, [1, 0] : vector<8x128xf32> -> vector<128x8xf32>
    %20 = vector.extract_strided_slice %19 {offsets = [0, 0], sizes = [8, 8], strides = [1, 1]} : vector<128x8xf32> to vector<8x8xf32>
    %c0_8 = arith.constant 0 : index
    %c0_9 = arith.constant 0 : index
    %21 = vector.load %arg3[%c0_8, %c0_9] : memref<8x8xf32, #tpu.memory_space<vmem>>, vector<8x8xf32>
    tpu.vector_store %arg3[%c0_8, %c0_9], %20 {strides = array<i32>} : memref<8x8xf32, #tpu.memory_space<vmem>>, vector<8x8xf32>,
    return
  }
  func.func @transform_0(%arg0: i32) -> (i32, i32) {
    %c0_i32 = arith.constant 0 : i32
    %c0_i32_0 = arith.constant 0 : i32
    return %arg0, %c0_i32 : i32, i32
  }
  func.func @transform_1(%arg0: i32) -> (i32, i32) {
    %c0_i32 = arith.constant 0 : i32
    %c0_i32_0 = arith.constant 0 : i32
    %c0_i32_1 = arith.constant 0 : i32
    return %c0_i32, %c0_i32_0 : i32, i32
  }
  func.func @transform_2(%arg0: i32) -> (i32, i32) {
    %c0_i32 = arith.constant 0 : i32
    %c0_i32_0 = arith.constant 0 : i32
    return %c0_i32, %arg0 : i32, i32
  }
}

</mosaic_0001>

<llo_original>
// kernel: mlp_base_forward.1
$region0: #{mlp_base_forward.1}
  #allocation0 [shape = 'u32[]', space=smem, size = 0x4, offset = 0x4, fixed_abs, tag = 'smem constant byte address 0x4 - core index']
  #allocation1 [shape = 'u32[144,128]{1,0:T(1,128)}', space=vmem, size = 0x12000, scoped, tag = 'internal scratch']
  %s0 = inlined_call_operand.hbm [shape: f32[8,32], index: 0, kind: input, shape index: {}]
  %s1 = inlined_call_operand.hbm [shape: f32[296,128], index: 1, kind: input, shape index: {}]
  %s2 = inlined_call_operand.vmem [shape: f32[8,8], index: 2, kind: output, shape index: {}]
  %s3 = sld [smem:[#allocation0]]
  $region26: #{mlp_base_forward.1} parent=0
    _
  %s5 = ssub.s32 1, %s3
  %s6 = scalar_select 0, %s5, %s3
  $region1: #{mlp_base_forward.1} parent=0
    #allocation2 [shape = 'u8[4096]{0}', space=vmem, size = 0x1000, scoped, tag = 'input window, operand 0, single buffered']
    #allocation3 [shape = 's32[1]{0}', space=sflag, size = 0x4, scoped, tag = 'scoped memory for mlp_base_forward.1']
    #allocation4 [shape = 'u8[151552]{0}', space=vmem, size = 0x25000, scoped, tag = 'input window, operand 1, single buffered']
    #allocation5 [shape = 's32[1]{0}', space=sflag, size = 0x4, scoped, tag = 'scoped memory for mlp_base_forward.1']
    %7 = vsyncpa [#allocation3], 0
    %8 = vsyncpa [#allocation5], 0
    // Predicated region
    $region2: #{mlp_base_forward.1} parent=1 // pred_check
      _
    $region3: #{mlp_base_forward.1} parent=1 // pred_check_branch
      %10 = sbr.rel (0) target = $region5
    $region4: #{mlp_base_forward.1} parent=1 // pred_region
      %s12 = ssub.s32 128, 128
      %13 = vsyncadd [#allocation3], %s12
      %s15 = sshll.u32 [#allocation2], 4
      %s16 = int_to_ptr.vmem [resolvable:$true] %s15
      %18 = dma.hbm_to_vmem [thread:$0]  %s0, 128, %s16, [#allocation3]
    $region5: #{mlp_base_forward.1} parent=1 // pred_fallthru
      _
    // Predicated region
    $region6: #{mlp_base_forward.1} parent=1 // pred_check
      _
    $region7: #{mlp_base_forward.1} parent=1 // pred_check_branch
      %20 = sbr.rel (0) target = $region9
    $region8: #{mlp_base_forward.1} parent=1 // pred_region
      %s22 = ssub.s32 4736, 4736
      %23 = vsyncadd [#allocation5], %s22
      %s24 = sshll.u32 [#allocation4], 4
      %s25 = int_to_ptr.vmem [resolvable:$true] %s24
      %30 = dma.hbm_to_vmem [thread:$0]  %s1, 4736, %s25, [#allocation5], 128, 128, 8
    $region9: #{mlp_base_forward.1} parent=1 // pred_fallthru
      _
    // Predicated region
    $region10: #{mlp_base_forward.1} parent=1 // pred_check
      _
    $region11: #{mlp_base_forward.1} parent=1 // pred_check_branch
      %32 = sbr.rel (0) target = $region13
    $region12: #{mlp_base_forward.1} parent=1 // pred_region
      %33 = dma.done [#allocation3], 128
    $region13: #{mlp_base_forward.1} parent=1 // pred_fallthru
      _
    // Predicated region
    $region14: #{mlp_base_forward.1} parent=1 // pred_check
      _
    $region15: #{mlp_base_forward.1} parent=1 // pred_check_branch
      %35 = sbr.rel (0) target = $region17
    $region16: #{mlp_base_forward.1} parent=1 // pred_region
      %36 = dma.done [#allocation5], 4736
    $region17: #{mlp_base_forward.1} parent=1 // pred_fallthru
      _
    %v37 = vld [vmem:[#allocation2] sm:$0xff]
    %v38 = vld [vmem:[#allocation4] sm:$0xff]
    %v39 = vld [vmem:[#allocation4 + $0x8] sm:$0xff]
    %v40 = vld [vmem:[#allocation4 + $0x10] sm:$0xff]
    %v41 = vld [vmem:[#allocation4 + $0x18] sm:$0xff]
    %v42 = vld [vmem:[#allocation4 + $0x20] sm:$0xff]
    %v43 = vld [vmem:[#allocation4 + $0x28] sm:$0xff]
    %v44 = vld [vmem:[#allocation4 + $0x30] sm:$0xff]
    %v45 = vld [vmem:[#allocation4 + $0x38] sm:$0xff]
    %v46 = vld [vmem:[#allocation4 + $0x40] sm:$0xff]
    %v47 = vld [vmem:[#allocation4 + $0x48] sm:$0xff]
    %v48 = vld [vmem:[#allocation4 + $0x50] sm:$0xff]
    %v49 = vld [vmem:[#allocation4 + $0x58] sm:$0xff]
    %v50 = vld [vmem:[#allocation4 + $0x60] sm:$0xff]
    %v51 = vld [vmem:[#allocation4 + $0x68] sm:$0xff]
    %v52 = vld [vmem:[#allocation4 + $0x70] sm:$0xff]
    %v53 = vld [vmem:[#allocation4 + $0x78] sm:$0xff]
    %v54 = vld [vmem:[#allocation4 + $0x80] sm:$0xff]
    %v55 = vld [vmem:[#allocation4 + $0x88] sm:$0xff]
    %v56 = vld [vmem:[#allocation4 + $0x90] sm:$0xff]
    %v57 = vld [vmem:[#allocation4 + $0x98] sm:$0xff]
    %v58 = vld [vmem:[#allocation4 + $0xa0] sm:$0xff]
    %v59 = vld [vmem:[#allocation4 + $0xa8] sm:$0xff]
    %v60 = vld [vmem:[#allocation4 + $0xb0] sm:$0xff]
    %v61 = vld [vmem:[#allocation4 + $0xb8] sm:$0xff]
    %v62 = vld [vmem:[#allocation4 + $0xc0] sm:$0xff]
    %v63 = vld [vmem:[#allocation4 + $0xc8] sm:$0xff]
    %v64 = vld [vmem:[#allocation4 + $0xd0] sm:$0xff]
    %v65 = vld [vmem:[#allocation4 + $0xd8] sm:$0xff]
    %v66 = vld [vmem:[#allocation4 + $0xe0] sm:$0xff]
    %v67 = vld [vmem:[#allocation4 + $0xe8] sm:$0xff]
    %v68 = vld [vmem:[#allocation4 + $0xf0] sm:$0xff]
    %v69 = vld [vmem:[#allocation4 + $0xf8] sm:$0xff]
    %v70 = vld [vmem:[#allocation4 + $0x100] sm:$0xff]
    %v71 = vld [vmem:[#allocation4 + $0x108] sm:$0xff]
    %v72 = vld [vmem:[#allocation4 + $0x110] sm:$0xff]
    %v73 = vld [vmem:[#allocation4 + $0x118] sm:$0xff]
    %v74 = vld [vmem:[#allocation4 + $0x120] sm:$0xff]
    %v75 = vlaneseq
    %v76 = vshrl.u32 %v75, 7
    %v77 = vsub.s32 0, %v76
    %v78 = vrot.slane %v74, %v77
    %vm79 = vcmask 261120
    %v81 = vsel %vm79, %v37, 0
    %83 = vmatprep.subr.mxu0 0.0
    %84 = vmatpush1.msra.mxu0 %v38
    %85 = vmatprep.subr.mxu0 0.0
    %86 = vmatpush1.msra.mxu0 %v39
    %87 = vmatprep.subr.mxu0 0.0
    %88 = vmatpush1.msra.mxu0 %v40
    %89 = vmatprep.subr.mxu0 0.0
    %90 = vmatpush1.msra.mxu0 %v41
    %91 = vmatprep.subr.mxu0 0.0
    %92 = vmatpush1.msra.mxu0 0.0
    %93 = vmatprep.subr.mxu0 0.0
    %94 = vmatpush1.msra.mxu0 0.0
    %95 = vmatprep.subr.mxu0 0.0
    %96 = vmatpush1.msra.mxu0 0.0
    %97 = vmatprep.subr.mxu0 0.0
    %98 = vmatpush1.msra.mxu0 0.0
    %99 = vmatprep.subr.mxu0 0.0
    %100 = vmatpush1.msra.mxu0 0.0
    %101 = vmatprep.subr.mxu0 0.0
    %102 = vmatpush1.msra.mxu0 0.0
    %103 = vmatprep.subr.mxu0 0.0
    %104 = vmatpush1.msra.mxu0 0.0
    %105 = vmatprep.subr.mxu0 0.0
    %106 = vmatpush1.msra.mxu0 0.0
    %107 = vmatprep.subr.mxu0 0.0
    %108 = vmatpush1.msra.mxu0 0.0
    %109 = vmatprep.subr.mxu0 0.0
    %110 = vmatpush1.msra.mxu0 0.0
    %111 = vmatprep.subr.mxu0 0.0
    %112 = vmatpush1.msra.mxu0 0.0
    %113 = vmatprep.subr.mxu0 0.0
    %114 = vmatpush1.msra.mxu0 0.0
    %115 = vmatprep.subr.mxu0 0.0
    %116 = vmatpush1.msra.mxu0 0.0
    %117 = vmatprep.subr.mxu0 0.0
    %118 = vmatpush1.msra.mxu0 0.0
    %119 = vmatprep.subr.mxu0 0.0
    %120 = vmatpush1.msra.mxu0 0.0
    %121 = vmatprep.subr.mxu0 0.0
    %122 = vmatpush1.msra.mxu0 0.0
    %123 = vmatprep.subr.mxu0 0.0
    %124 = vmatpush1.msra.mxu0 0.0
    %125 = vmatprep.subr.mxu0 0.0
    %126 = vmatpush1.msra.mxu0 0.0
    %127 = vmatprep.subr.mxu0 0.0
    %128 = vmatpush1.msra.mxu0 0.0
    %129 = vmatprep.subr.mxu0 0.0
    %130 = vmatpush1.msra.mxu0 0.0
    %131 = vmatprep.subr.mxu0 0.0
    %132 = vmatpush1.msra.mxu0 0.0
    %133 = vmatprep.subr.mxu0 0.0
    %134 = vmatpush1.msra.mxu0 0.0
    %135 = vmatprep.subr.mxu0 0.0
    %136 = vmatpush1.msra.mxu0 0.0
    %137 = vmatprep.subr.mxu0 0.0
    %138 = vmatpush1.msra.mxu0 0.0
    %139 = vmatprep.subr.mxu0 0.0
    %140 = vmatpush1.msra.mxu0 0.0
    %141 = vmatprep.subr.mxu0 0.0
    %142 = vmatpush1.msra.mxu0 0.0
    %143 = vmatprep.subr.mxu0 0.0
    %144 = vmatpush1.msra.mxu0 0.0
    %145 = vmatprep.subr.mxu0 0.0
    %146 = vmatpush1.msra.mxu0 0.0
    %147 = vmatprep.mubr.f32.mxu0 0.0
    %148 = vmatmul.mubr.f32.gmra.mrb[0].mxu0 %v81
    %v149 = vpop.f32.mrb[0].mxu0
    %v150 = vadd.f32 %v78, %v149
    %v151 = vpop.f32.mrb[0].mxu0
    %152 = vdwg.mxu0
    %v153 = vtanh.pop %v150
    %v154 = vlaneseq
    %v155 = vshrl.u32 %v154, 7
    %v156 = vsub.s32 1, %v155
    %v157 = vrot.slane %v74, %v156
    %158 = vmatprep.subr.mxu0 0.0
    %159 = vmatpush1.msra.mxu0 %v42
    %160 = vmatprep.subr.mxu0 0.0
    %161 = vmatpush1.msra.mxu0 %v43
    %162 = vmatprep.subr.mxu0 0.0
    %163 = vmatpush1.msra.mxu0 %v44
    %164 = vmatprep.subr.mxu0 0.0
    %165 = vmatpush1.msra.mxu0 %v45
    %166 = vmatprep.subr.mxu0 0.0
    %167 = vmatpush1.msra.mxu0 %v46
    %168 = vmatprep.subr.mxu0 0.0
    %169 = vmatpush1.msra.mxu0 %v47
    %170 = vmatprep.subr.mxu0 0.0
    %171 = vmatpush1.msra.mxu0 %v48
    %172 = vmatprep.subr.mxu0 0.0
    %173 = vmatpush1.msra.mxu0 %v49
    %174 = vmatprep.subr.mxu0 0.0
    %175 = vmatpush1.msra.mxu0 %v50
    %176 = vmatprep.subr.mxu0 0.0
    %177 = vmatpush1.msra.mxu0 %v51
    %178 = vmatprep.subr.mxu0 0.0
    %179 = vmatpush1.msra.mxu0 %v52
    %180 = vmatprep.subr.mxu0 0.0
    %181 = vmatpush1.msra.mxu0 %v53
    %182 = vmatprep.subr.mxu0 0.0
    %183 = vmatpush1.msra.mxu0 %v54
    %184 = vmatprep.subr.mxu0 0.0
    %185 = vmatpush1.msra.mxu0 %v55
    %186 = vmatprep.subr.mxu0 0.0
    %187 = vmatpush1.msra.mxu0 %v56
    %188 = vmatprep.subr.mxu0 0.0
    %189 = vmatpush1.msra.mxu0 %v57
    %190 = vmatprep.subr.mxu0 0.0
    %191 = vmatpush1.msra.mxu0 0.0
    %192 = vmatprep.subr.mxu0 0.0
    %193 = vmatpush1.msra.mxu0 0.0
    %194 = vmatprep.subr.mxu0 0.0
    %195 = vmatpush1.msra.mxu0 0.0
    %196 = vmatprep.subr.mxu0 0.0
    %197 = vmatpush1.msra.mxu0 0.0
    %198 = vmatprep.subr.mxu0 0.0
    %199 = vmatpush1.msra.mxu0 0.0
    %200 = vmatprep.subr.mxu0 0.0
    %201 = vmatpush1.msra.mxu0 0.0
    %202 = vmatprep.subr.mxu0 0.0
    %203 = vmatpush1.msra.mxu0 0.0
    %204 = vmatprep.subr.mxu0 0.0
    %205 = vmatpush1.msra.mxu0 0.0
    %206 = vmatprep.subr.mxu0 0.0
    %207 = vmatpush1.msra.mxu0 0.0
    %208 = vmatprep.subr.mxu0 0.0
    %209 = vmatpush1.msra.mxu0 0.0
    %210 = vmatprep.subr.mxu0 0.0
    %211 = vmatpush1.msra.mxu0 0.0
    %212 = vmatprep.subr.mxu0 0.0
    %213 = vmatpush1.msra.mxu0 0.0
    %214 = vmatprep.subr.mxu0 0.0
    %215 = vmatpush1.msra.mxu0 0.0
    %216 = vmatprep.subr.mxu0 0.0
    %217 = vmatpush1.msra.mxu0 0.0
    %218 = vmatprep.subr.mxu0 0.0
    %219 = vmatpush1.msra.mxu0 0.0
    %220 = vmatprep.subr.mxu0 0.0
    %221 = vmatpush1.msra.mxu0 0.0
    %222 = vmatprep.mubr.f32.mxu0 0.0
    %223 = vmatmul.mubr.f32.gmra.mrb[0].mxu0 %v153
    %v224 = vpop.f32.mrb[0].mxu0
    %v225 = vadd.f32 %v157, %v224
    %v226 = vpop.f32.mrb[0].mxu0
    %227 = vdwg.mxu0
    %v228 = vtanh.pop %v225
    %v229 = vlaneseq
    %v230 = vshrl.u32 %v229, 7
    %v231 = vsub.s32 2, %v230
    %v232 = vrot.slane %v74, %v231
    %233 = vmatprep.subr.mxu0 0.0
    %234 = vmatpush1.msra.mxu0 %v58
    %235 = vmatprep.subr.mxu0 0.0
    %236 = vmatpush1.msra.mxu0 %v59
    %237 = vmatprep.subr.mxu0 0.0
    %238 = vmatpush1.msra.mxu0 %v60
    %239 = vmatprep.subr.mxu0 0.0
    %240 = vmatpush1.msra.mxu0 %v61
    %241 = vmatprep.subr.mxu0 0.0
    %242 = vmatpush1.msra.mxu0 %v62
    %243 = vmatprep.subr.mxu0 0.0
    %244 = vmatpush1.msra.mxu0 %v63
    %245 = vmatprep.subr.mxu0 0.0
    %246 = vmatpush1.msra.mxu0 %v64
    %247 = vmatprep.subr.mxu0 0.0
    %248 = vmatpush1.msra.mxu0 %v65
    %249 = vmatprep.subr.mxu0 0.0
    %250 = vmatpush1.msra.mxu0 %v66
    %251 = vmatprep.subr.mxu0 0.0
    %252 = vmatpush1.msra.mxu0 %v67
    %253 = vmatprep.subr.mxu0 0.0
    %254 = vmatpush1.msra.mxu0 %v68
    %255 = vmatprep.subr.mxu0 0.0
    %256 = vmatpush1.msra.mxu0 %v69
    %257 = vmatprep.subr.mxu0 0.0
    %258 = vmatpush1.msra.mxu0 %v70
    %259 = vmatprep.subr.mxu0 0.0
    %260 = vmatpush1.msra.mxu0 %v71
    %261 = vmatprep.subr.mxu0 0.0
    %262 = vmatpush1.msra.mxu0 %v72
    %263 = vmatprep.subr.mxu0 0.0
    %264 = vmatpush1.msra.mxu0 %v73
    %265 = vmatprep.subr.mxu0 0.0
    %266 = vmatpush1.msra.mxu0 0.0
    %267 = vmatprep.subr.mxu0 0.0
    %268 = vmatpush1.msra.mxu0 0.0
    %269 = vmatprep.subr.mxu0 0.0
    %270 = vmatpush1.msra.mxu0 0.0
    %271 = vmatprep.subr.mxu0 0.0
    %272 = vmatpush1.msra.mxu0 0.0
    %273 = vmatprep.subr.mxu0 0.0
    %274 = vmatpush1.msra.mxu0 0.0
    %275 = vmatprep.subr.mxu0 0.0
    %276 = vmatpush1.msra.mxu0 0.0
    %277 = vmatprep.subr.mxu0 0.0
    %278 = vmatpush1.msra.mxu0 0.0
    %279 = vmatprep.subr.mxu0 0.0
    %280 = vmatpush1.msra.mxu0 0.0
    %281 = vmatprep.subr.mxu0 0.0
    %282 = vmatpush1.msra.mxu0 0.0
    %283 = vmatprep.subr.mxu0 0.0
    %284 = vmatpush1.msra.mxu0 0.0
    %285 = vmatprep.subr.mxu0 0.0
    %286 = vmatpush1.msra.mxu0 0.0
    %287 = vmatprep.subr.mxu0 0.0
    %288 = vmatpush1.msra.mxu0 0.0
    %289 = vmatprep.subr.mxu0 0.0
    %290 = vmatpush1.msra.mxu0 0.0
    %291 = vmatprep.subr.mxu0 0.0
    %292 = vmatpush1.msra.mxu0 0.0
    %293 = vmatprep.subr.mxu0 0.0
    %294 = vmatpush1.msra.mxu0 0.0
    %295 = vmatprep.subr.mxu0 0.0
    %296 = vmatpush1.msra.mxu0 0.0
    %297 = vmatprep.mubr.f32.mxu0 0.0
    %298 = vmatmul.mubr.f32.gmra.mrb[0].mxu0 %v228
    %v299 = vpop.f32.mrb[0].mxu0
    %v300 = vadd.f32 %v232, %v299
    %v301 = vpop.f32.mrb[0].mxu0
    %302 = vdwg.mxu0
    %303 = vxpose.xlu0.b32.start [1/16] %v300, 128
    %304 = vxpose.xlu0.b32.cont [2/16] 0.0, 128
    %305 = vxpose.xlu0.b32.cont [3/16] 0.0, 128
    %306 = vxpose.xlu0.b32.cont [4/16] 0.0, 128
    %307 = vxpose.xlu0.b32.cont [5/16] 0.0, 128
    %308 = vxpose.xlu0.b32.cont [6/16] 0.0, 128
    %309 = vxpose.xlu0.b32.cont [7/16] 0.0, 128
    %310 = vxpose.xlu0.b32.cont [8/16] 0.0, 128
    %311 = vxpose.xlu0.b32.cont [9/16] 0.0, 128
    %312 = vxpose.xlu0.b32.cont [10/16] 0.0, 128
    %313 = vxpose.xlu0.b32.cont [11/16] 0.0, 128
    %314 = vxpose.xlu0.b32.cont [12/16] 0.0, 128
    %315 = vxpose.xlu0.b32.cont [13/16] 0.0, 128
    %316 = vxpose.xlu0.b32.cont [14/16] 0.0, 128
    %317 = vxpose.xlu0.b32.cont [15/16] 0.0, 128
    %318 = vxpose.xlu0.b32.end [16/16] 0.0, 128
    %v319 = vpop.trf.xlu0
    %v320 = vpop.trf.xlu0
    %v321 = vpop.trf.xlu0
    %v322 = vpop.trf.xlu0
    %v323 = vpop.trf.xlu0
    %v324 = vpop.trf.xlu0
    %v325 = vpop.trf.xlu0
    %v326 = vpop.trf.xlu0
    %v327 = vpop.trf.xlu0
    %v328 = vpop.trf.xlu0
    %v329 = vpop.trf.xlu0
    %v330 = vpop.trf.xlu0
    %v331 = vpop.trf.xlu0
    %v332 = vpop.trf.xlu0
    %v333 = vpop.trf.xlu0
    %v334 = vpop.trf.xlu0
    %vm335 = vcmask 64512
    %336 = vst.msk [vmem:[%s2] sm:$0xff] %vm335, %v319
    // Predicated region
    $region18: #{mlp_base_forward.1} parent=1 // pred_check
      _
    $region19: #{mlp_base_forward.1} parent=1 // pred_check_branch
      %338 = sbr.rel (0) target = $region21
    $region20: #{mlp_base_forward.1} parent=1 // pred_region
      _
    $region21: #{mlp_base_forward.1} parent=1 // pred_fallthru
      _
    // Predicated region
    $region22: #{mlp_base_forward.1} parent=1 // pred_check
      _
    $region23: #{mlp_base_forward.1} parent=1 // pred_check_branch
      %340 = sbr.rel (0) target = $region25
    $region24: #{mlp_base_forward.1} parent=1 // pred_region
      _
    $region25: #{mlp_base_forward.1} parent=1 // pred_fallthru
      _
    %341 = vsyncpa [#allocation3], 1
    %342 = vsyncpa [#allocation5], 1

</llo_original>
